<compile_context>
chip_gen: v7x
topology: tpu7x:2x2x1
jax: 0.10.0
libtpu: 0.0.40
codegen_flags: <defaults>
</compile_context>

<pallas_src>
import functools

import jax
import jax.numpy as jnp
from jax.experimental import pallas as pl
from jax.experimental.pallas import tpu as pltpu


def _round_up(x, m):
    return ((x + m - 1) // m) * m


_VMEM_CAP = 64 << 20          # safe cap on every listed generation (v7x = 64 MiB)
_VMEM_SLACK = 8 << 20         # headroom for (8,128) tile padding + internal scratch


# ----------------------------------------------------------------------------
# Kernel 1: fused memory attention + LSTM input projection
#   out = softmax(q @ K'^T) @ V' + x @ Wx^T + bias        (all gate pre-acts)
#   K' already carries inv_temp; V' = mem_values @ Wc^T.
# ----------------------------------------------------------------------------
def _gates_kernel(q_ref, kT_ref, vprime_ref, x_ref, wxT_ref, b_ref, out_ref):
    # q/x arrive f32 from HBM; cast to bf16 in-kernel (hides under MXU).
    q = q_ref[...].astype(jnp.bfloat16)                             # (blk, E)
    scores = jnp.dot(q, kT_ref[...],
                     preferred_element_type=jnp.float32)            # (blk, M)
    m = jnp.max(scores, axis=-1, keepdims=True)
    p = jnp.exp(scores - m)
    denom = jnp.sum(p, axis=-1, keepdims=True)
    probs = (p * pl.reciprocal(denom, approx=True)).astype(jnp.bfloat16)
    ctx_gates = jnp.dot(probs, vprime_ref[...],
                        preferred_element_type=jnp.float32)          # (blk, 4H)
    x_gates = jnp.dot(x_ref[...].astype(jnp.bfloat16), wxT_ref[...],
                      preferred_element_type=jnp.float32)            # (blk, 4H)
    out_ref[...] = (ctx_gates + x_gates + b_ref[...]).astype(out_ref.dtype)


def fused_gate_precompute(q, keys, vprime, w_x, bias, x, *, inv_temp=1.0,
                          max_block_n=512):
    """q, x: (N, E) f32; keys: (M, E); vprime: (M, 4H); w_x: (4H, E); bias: (4H,).

    Returns gate pre-activations (N, 4H) bf16 (input + memory-context parts).
    """
    n, e = q.shape
    m_sz = keys.shape[0]
    g = vprime.shape[1]

    # Pad only to a multiple of 8 (sublane), never to a full block.
    n8 = _round_up(n, 8)
    if n8 != n:
        pad = ((0, n8 - n), (0, 0))
        q = jnp.pad(q, pad)
        x = jnp.pad(x, pad)
    blk = min(max_block_n, n8)
    n_blocks = pl.cdiv(n8, blk)                 # ragged last block is masked

    # Fold inv_temp into the small (E, M) key matrix — one pass over M*E
    # instead of an extra XLA pass over the (N, E) query stream.
    kT = (jnp.transpose(keys) * jnp.float32(inv_temp)).astype(jnp.bfloat16)
    vprime_b = vprime.astype(jnp.bfloat16)                           # (M, 4H)
    wxT = jnp.transpose(w_x).astype(jnp.bfloat16)                    # (E, 4H)
    bias2d = bias.reshape(1, g).astype(jnp.float32)

    # Double-buffered block bytes (residents counted twice as well — no
    # Buffered(1) used, see header note).
    blk_bytes = 2 * (blk * e * 4 + e * m_sz * 2 + m_sz * g * 2 +
                     blk * e * 4 + e * g * 2 + g * 4 + blk * g * 2)
    vmem_limit = min(_VMEM_CAP, blk_bytes + _VMEM_SLACK)

    out = pl.pallas_call(
        _gates_kernel,
        out_shape=jax.ShapeDtypeStruct((n8, g), jnp.bfloat16),
        grid=(n_blocks,),
        in_specs=[
            pl.BlockSpec((blk, e), lambda i: (i, 0)),     # q tile (f32)
            pl.BlockSpec((e, m_sz), lambda i: (0, 0)),    # K'^T (resident)
            pl.BlockSpec((m_sz, g), lambda i: (0, 0)),    # V'   (resident)
            pl.BlockSpec((blk, e), lambda i: (i, 0)),     # x tile (f32)
            pl.BlockSpec((e, g), lambda i: (0, 0)),       # Wx^T (resident)
            pl.BlockSpec((1, g), lambda i: (0, 0)),       # bias (resident)
        ],
        out_specs=pl.BlockSpec((blk, g), lambda i: (i, 0)),
        compiler_params=pltpu.CompilerParams(
            dimension_semantics=("parallel",),
            vmem_limit_bytes=vmem_limit),
    )(q, kT, vprime_b, x, wxT, bias2d)
    return out[:n]


# ----------------------------------------------------------------------------
# Kernel 2: LSTM recurrence over precomputed gate pre-activations (bf16).
#   Grid = (batch blocks ["parallel"], time blocks ["arbitrary"]); h/c carried
#   in VMEM scratch across time blocks; last *valid* hidden state emitted.
#   Gate layout is (i, f, o, g): one wide sigmoid + one tanh per step.
# ----------------------------------------------------------------------------
def _lstm_kernel(gates_ref, whh_t_ref, len_ref, out_ref, h_ref, c_ref, *,
                 hidden, t_block, unroll):
    H = hidden
    tb = pl.program_id(1)
    nt = pl.num_programs(1)

    @pl.when(tb == 0)
    def _():
        h_ref[...] = jnp.zeros_like(h_ref)
        c_ref[...] = jnp.zeros_like(c_ref)

    whh_t = whh_t_ref[...]                      # (H, 4H) bf16, hoisted
    lens = len_ref[...]                         # (bb, 1) int32
    t0 = tb * t_block

    def step(s, carry):
        h, c = carry
        # bf16 gates from HBM, f32 accumulate with the recurrent matmul.
        gates = gates_ref[s].astype(jnp.float32) + jnp.dot(
            h.astype(jnp.bfloat16), whh_t, preferred_element_type=jnp.float32)
        sig = jax.nn.sigmoid(gates[:, :3 * H])      # i | f | o   (one EUP op)
        g_g = jnp.tanh(gates[:, 3 * H:])            # g           (one EUP op)
        i_g = sig[:, :H]
        f_g = sig[:, H:2 * H]
        o_g = sig[:, 2 * H:3 * H]
        c_new = f_g * c + i_g * g_g
        h_new = o_g * jnp.tanh(c_new)
        valid = (t0 + s) < lens                     # freeze past sequence end
        return (jnp.where(valid, h_new, h), jnp.where(valid, c_new, c))

    h_last, c_last = jax.lax.fori_loop(0, t_block, step,
                                       (h_ref[...], c_ref[...]), unroll=unroll)
    h_ref[...] = h_last
    c_ref[...] = c_last

    @pl.when(tb == nt - 1)
    def _():
        out_ref[...] = h_last


def lstm_seq2vec(gates_pre, lengths, w_hh, *, batch_block=None, time_block=None):
    """gates_pre: (T, B, 4H) bf16 (i,f,o,g order), lengths: (B,). Returns (B, H) f32."""
    T, B, G = gates_pre.shape
    H = w_hh.shape[1]
    assert G == 4 * H

    whh_t = jnp.transpose(w_hh).astype(jnp.bfloat16)     # (H, 4H)
    len2d = lengths.astype(jnp.int32).reshape(B, 1)

    # >=2 batch blocks when B allows (fills MXU rows, shards across v7x TCs).
    bb = min(B, 256) if batch_block is None else batch_block
    # Time tile sized so the bf16 gate block stays well inside VMEM.
    if time_block is None:
        tT = max(1, min(T, (8 << 20) // max(1, bb * G * 2)))
    else:
        tT = time_block
    nb = pl.cdiv(B, bb)
    nt = pl.cdiv(T, tT)
    unroll = tT if tT <= 8 else 8                        # partial unroll

    blk_bytes = (2 * (tT * bb * G * 2 + H * G * 2 + bb * 4 + bb * H * 4)
                 + 2 * bb * H * 4)                       # + h/c scratch
    vmem_limit = min(_VMEM_CAP, blk_bytes + _VMEM_SLACK)

    kernel = functools.partial(_lstm_kernel, hidden=H, t_block=tT, unroll=unroll)
    return pl.pallas_call(
        kernel,
        out_shape=jax.ShapeDtypeStruct((B, H), jnp.float32),
        grid=(nb, nt),
        in_specs=[
            pl.BlockSpec((tT, bb, G), lambda b, t: (t, b, 0)),   # gate tile
            pl.BlockSpec((H, G), lambda b, t: (0, 0)),           # Whh^T resident
            pl.BlockSpec((bb, 1), lambda b, t: (b, 0)),          # lengths
        ],
        out_specs=pl.BlockSpec((bb, H), lambda b, t: (b, 0)),
        scratch_shapes=[pltpu.VMEM((bb, H), jnp.float32),        # h carry
                        pltpu.VMEM((bb, H), jnp.float32)],       # c carry
        compiler_params=pltpu.CompilerParams(
            dimension_semantics=("parallel", "arbitrary"),
            vmem_limit_bytes=vmem_limit),
    )(gates_pre, whh_t, len2d)


# ----------------------------------------------------------------------------
# HashedMemoryRNN forward (glue in plain JAX, hot paths in Pallas kernels)
# ----------------------------------------------------------------------------
def init_params(key, *, vocab, e_dim, h_dim, mem_size, mem_context_size):
    ks = jax.random.split(key, 7)
    scale = 1.0 / jnp.sqrt(h_dim)
    in_dim = e_dim + mem_context_size                # memory.get_input_size()
    u = lambda k, shape, s: jax.random.uniform(k, shape, jnp.float32, -s, s)
    return {
        "emb": jax.random.normal(ks[0], (vocab, e_dim), jnp.float32) * 0.1,
        "mem_keys": jax.random.normal(ks[1], (mem_size, e_dim), jnp.float32) * 0.1,
        "mem_values": jax.random.normal(ks[2], (mem_size, mem_context_size),
                                        jnp.float32) * 0.1,
        "w_ih": u(ks[3], (4 * h_dim, in_dim), scale),
        "w_hh": u(ks[4], (4 * h_dim, h_dim), scale),
        "b_ih": u(ks[5], (4 * h_dim,), scale),
        "b_hh": u(ks[6], (4 * h_dim,), scale),
    }


def hashed_memory_rnn_forward(params, input_seqs, input_lengths, mem_tokens,
                              inv_temp=1.0):
    """input_seqs: (T, B, E), input_lengths: (B,), mem_tokens: (T, B) int32."""
    T, B, E = input_seqs.shape
    H = params["w_hh"].shape[1]

    # access_seq = self.memory_embeddings(mem_tokens)   (gather stays in XLA)
    access_seq = jnp.take(params["emb"], mem_tokens, axis=0)       # (T, B, E)

    # Reorder LSTM gate rows from PyTorch's (i, f, g, o) to (i, f, o, g) once,
    # so the recurrence applies one sigmoid over [:, :3H] and one tanh over
    # [:, 3H:] (fewer EUP launches, lane-aligned slices when H % 128 == 0).
    r = jnp.arange(H)
    perm = jnp.concatenate([r, H + r, 3 * H + r, 2 * H + r])
    w_ih = params["w_ih"][perm]                                    # (4H, E+C)
    w_hh = params["w_hh"][perm]                                    # (4H, H)
    bias = (params["b_ih"] + params["b_hh"])[perm]                 # (4H,)

    # Split W_ih according to the [input, memory-context] concat order and
    # fold the context projection into the memory values:  V' = V @ Wc^T.
    w_x = w_ih[:, :E]                                              # (4H, E)
    w_c = w_ih[:, E:]                                              # (4H, C)
    vprime = jnp.dot(params["mem_values"], jnp.transpose(w_c))     # (M, 4H)

    n = T * B
    q = access_seq.reshape(n, E)          # plain reshape — no scale, no cast
    x = input_seqs.reshape(n, E)

    gates_pre = fused_gate_precompute(q, params["mem_keys"], vprime, w_x, bias,
                                      x, inv_temp=inv_temp)        # (n,4H) bf16
    gates_pre = gates_pre.reshape(T, B, 4 * H)

    # return self.lstm(input_seq, input_lengths) -> last valid hidden (B, H)
    return lstm_seq2vec(gates_pre, input_lengths, w_hh)


# ----------------------------------------------------------------------------
# Pure-JAX reference of the *unfused* original computation (for validation)
# ----------------------------------------------------------------------------
def _reference_forward(params, input_seqs, input_lengths, mem_tokens,
                       inv_temp=1.0):
    T, B, E = input_seqs.shape
    H = params["w_hh"].shape[1]
    access = jnp.take(params["emb"], mem_tokens, axis=0)           # (T, B, E)
    scores = jnp.einsum("tbe,me->tbm", access, params["mem_keys"]) * inv_temp
    probs = jax.nn.softmax(scores, axis=-1)
    ctx = jnp.einsum("tbm,mc->tbc", probs, params["mem_values"])
    xin = jnp.concatenate([input_seqs, ctx], axis=-1)              # (T,B,E+C)
    w_ih, w_hh = params["w_ih"], params["w_hh"]
    bias = params["b_ih"] + params["b_hh"]

    def step(carry, inp):
        h, c = carry
        x_t, t = inp
        gates = x_t @ w_ih.T + h @ w_hh.T + bias
        i_g, f_g, g_g, o_g = jnp.split(gates, 4, axis=-1)
        i_g = jax.nn.sigmoid(i_g)
        f_g = jax.nn.sigmoid(f_g)
        g_g = jnp.tanh(g_g)
        o_g = jax.nn.sigmoid(o_g)
        c_new = f_g * c + i_g * g_g
        h_new = o_g * jnp.tanh(c_new)
        valid = (t < input_lengths)[:, None]
        return (jnp.where(valid, h_new, h), jnp.where(valid, c_new, c)), None

    init = (jnp.zeros((B, H), jnp.float32), jnp.zeros((B, H), jnp.float32))
    (h, _), _ = jax.lax.scan(step, init, (xin, jnp.arange(T)))
    return h


if __name__ == "__main__":
    T, B, E, H = 8, 2, 32, 32
    MEM_SIZE, MEM_CTX, VOCAB = 16, 32, 50

    key = jax.random.PRNGKey(0)
    k_params, k_x, k_tok = jax.random.split(key, 3)

    params = init_params(k_params, vocab=VOCAB, e_dim=E, h_dim=H,
                         mem_size=MEM_SIZE, mem_context_size=MEM_CTX)

    input_seqs = jax.random.normal(k_x, (T, B, E), jnp.float32)
    input_lengths = jnp.array([T, 5], dtype=jnp.int32)
    mem_tokens = jax.random.randint(k_tok, (T, B), 0, VOCAB, dtype=jnp.int32)

    out = hashed_memory_rnn_forward(params, input_seqs, input_lengths,
                                    mem_tokens, inv_temp=1.0)
    out = jax.block_until_ready(out)
    assert out.shape == (B, H), out.shape
    assert jnp.all(jnp.isfinite(out))

    ref = _reference_forward(params, input_seqs, input_lengths, mem_tokens,
                             inv_temp=1.0)
    ref = jax.block_until_ready(ref)
    assert jnp.max(jnp.abs(out - ref)) < 2e-2, float(jnp.max(jnp.abs(out - ref)))

    print("KERNEL_OK")
</pallas_src>

<mosaic_0001>
module attributes {stable_mosaic.version = 11 : i64} {
  func.func @_gates_kernel(%arg0: i32, %arg1: memref<16x32xf32, #tpu.memory_space<vmem>>, %arg2: memref<32x16xbf16, #tpu.memory_space<vmem>>, %arg3: memref<16x128xbf16, #tpu.memory_space<vmem>>, %arg4: memref<16x32xf32, #tpu.memory_space<vmem>>, %arg5: memref<32x128xbf16, #tpu.memory_space<vmem>>, %arg6: memref<1x128xf32, #tpu.memory_space<vmem>>, %arg7: memref<16x128xbf16, #tpu.memory_space<vmem>>) attributes {dimension_semantics = [#tpu.dimension_semantics<parallel>], iteration_bounds = array<i64: 1>, scalar_prefetch = 0 : i64, scratch_operands = 0 : i64, tpu.core_type = #tpu.core_type<tc>, window_params = [{transform_indices = @transform_0, window_bounds = array<i64: 16, 32>}, {pipeline_mode = #tpu.pipeline_mode<synchronous>, transform_indices = @transform_1, window_bounds = array<i64: 32, 16>}, {pipeline_mode = #tpu.pipeline_mode<synchronous>, transform_indices = @transform_2, window_bounds = array<i64: 16, 128>}, {transform_indices = @transform_3, window_bounds = array<i64: 16, 32>}, {pipeline_mode = #tpu.pipeline_mode<synchronous>, transform_indices = @transform_4, window_bounds = array<i64: 32, 128>}, {pipeline_mode = #tpu.pipeline_mode<synchronous>, transform_indices = @transform_5, window_bounds = array<i64: 1, 128>}, {transform_indices = @transform_6, window_bounds = array<i64: 16, 128>}]} {
    %c0 = arith.constant 0 : index
    %c0_0 = arith.constant 0 : index
    %0 = vector.load %arg1[%c0, %c0_0] : memref<16x32xf32, #tpu.memory_space<vmem>>, vector<16x32xf32>
    %1 = arith.truncf %0 : vector<16x32xf32> to vector<16x32xbf16>
    %c0_1 = arith.constant 0 : index
    %c0_2 = arith.constant 0 : index
    %2 = vector.load %arg2[%c0_1, %c0_2] : memref<32x16xbf16, #tpu.memory_space<vmem>>, vector<32x16xbf16>
    %cst = arith.constant dense<0.000000e+00> : vector<16x16xf32>
    %3 = tpu.matmul %1, %2, %cst {dimension_numbers = #tpu.dot_dimension_numbers<[1], [0], [0], [1], [0, 0, 1, 1], [], []>} : vector<16x32xbf16>, vector<32x16xbf16>, vector<16x16xf32> -> vector<16x16xf32>
    %cst_3 = arith.constant dense<0xFF800000> : vector<16xf32>
    %4 = vector.multi_reduction <maximumf>, %3, %cst_3 [1] : vector<16x16xf32> to vector<16xf32>
    %5 = vector.shape_cast %4 : vector<16xf32> to vector<16x1xf32>
    %6 = vector.broadcast %5 : vector<16x1xf32> to vector<16x16xf32>
    %7 = arith.subf %3, %6 : vector<16x16xf32>
    %8 = math.exp %7 : vector<16x16xf32>
    %cst_4 = arith.constant dense<0.000000e+00> : vector<16xf32>
    %9 = vector.multi_reduction <add>, %8, %cst_4 [1] : vector<16x16xf32> to vector<16xf32>
    %10 = vector.shape_cast %9 : vector<16xf32> to vector<16x1xf32>
    %11 = tpu.reciprocal %10 {approx = true} : vector<16x1xf32> -> vector<16x1xf32>
    %12 = vector.broadcast %11 : vector<16x1xf32> to vector<16x16xf32>
    %13 = arith.mulf %8, %12 : vector<16x16xf32>
    %14 = arith.truncf %13 : vector<16x16xf32> to vector<16x16xbf16>
    %c0_5 = arith.constant 0 : index
    %c0_6 = arith.constant 0 : index
    %15 = vector.load %arg3[%c0_5, %c0_6] : memref<16x128xbf16, #tpu.memory_space<vmem>>, vector<16x128xbf16>
    %cst_7 = arith.constant dense<0.000000e+00> : vector<16x128xf32>
    %16 = tpu.matmul %14, %15, %cst_7 {dimension_numbers = #tpu.dot_dimension_numbers<[1], [0], [0], [1], [0, 0, 1, 1], [], []>} : vector<16x16xbf16>, vector<16x128xbf16>, vector<16x128xf32> -> vector<16x128xf32>
    %c0_8 = arith.constant 0 : index
    %c0_9 = arith.constant 0 : index
    %17 = vector.load %arg4[%c0_8, %c0_9] : memref<16x32xf32, #tpu.memory_space<vmem>>, vector<16x32xf32>
    %18 = arith.truncf %17 : vector<16x32xf32> to vector<16x32xbf16>
    %c0_10 = arith.constant 0 : index
    %c0_11 = arith.constant 0 : index
    %19 = vector.load %arg5[%c0_10, %c0_11] : memref<32x128xbf16, #tpu.memory_space<vmem>>, vector<32x128xbf16>
    %cst_12 = arith.constant dense<0.000000e+00> : vector<16x128xf32>
    %20 = tpu.matmul %18, %19, %cst_12 {dimension_numbers = #tpu.dot_dimension_numbers<[1], [0], [0], [1], [0, 0, 1, 1], [], []>} : vector<16x32xbf16>, vector<32x128xbf16>, vector<16x128xf32> -> vector<16x128xf32>
    %21 = arith.addf %16, %20 : vector<16x128xf32>
    %c0_13 = arith.constant 0 : index
    %c0_14 = arith.constant 0 : index
    %22 = vector.load %arg6[%c0_13, %c0_14] : memref<1x128xf32, #tpu.memory_space<vmem>>, vector<1x128xf32>
    %23 = vector.broadcast %22 : vector<1x128xf32> to vector<16x128xf32>
    %24 = arith.addf %21, %23 : vector<16x128xf32>
    %25 = arith.truncf %24 : vector<16x128xf32> to vector<16x128xbf16>
    %c0_15 = arith.constant 0 : index
    %c0_16 = arith.constant 0 : index
    %26 = vector.load %arg7[%c0_15, %c0_16] : memref<16x128xbf16, #tpu.memory_space<vmem>>, vector<16x128xbf16>
    tpu.vector_store %arg7[%c0_15, %c0_16], %25 {strides = array<i32>} : memref<16x128xbf16, #tpu.memory_space<vmem>>, vector<16x128xbf16>,
    return
  }
  func.func @transform_0(%arg0: i32) -> (i32, i32) {
    %c0_i32 = arith.constant 0 : i32
    %c0_i32_0 = arith.constant 0 : i32
    return %arg0, %c0_i32 : i32, i32
  }
  func.func @transform_1(%arg0: i32) -> (i32, i32) {
    %c0_i32 = arith.constant 0 : i32
    %c0_i32_0 = arith.constant 0 : i32
    %c0_i32_1 = arith.constant 0 : i32
    return %c0_i32, %c0_i32_0 : i32, i32
  }
  func.func @transform_2(%arg0: i32) -> (i32, i32) {
    %c0_i32 = arith.constant 0 : i32
    %c0_i32_0 = arith.constant 0 : i32
    %c0_i32_1 = arith.constant 0 : i32
    return %c0_i32, %c0_i32_0 : i32, i32
  }
  func.func @transform_3(%arg0: i32) -> (i32, i32) {
    %c0_i32 = arith.constant 0 : i32
    %c0_i32_0 = arith.constant 0 : i32
    return %arg0, %c0_i32 : i32, i32
  }
  func.func @transform_4(%arg0: i32) -> (i32, i32) {
    %c0_i32 = arith.constant 0 : i32
    %c0_i32_0 = arith.constant 0 : i32
    %c0_i32_1 = arith.constant 0 : i32
    return %c0_i32, %c0_i32_0 : i32, i32
  }
  func.func @transform_5(%arg0: i32) -> (i32, i32) {
    %c0_i32 = arith.constant 0 : i32
    %c0_i32_0 = arith.constant 0 : i32
    %c0_i32_1 = arith.constant 0 : i32
    return %c0_i32, %c0_i32_0 : i32, i32
  }
  func.func @transform_6(%arg0: i32) -> (i32, i32) {
    %c0_i32 = arith.constant 0 : i32
    %c0_i32_0 = arith.constant 0 : i32
    return %arg0, %c0_i32 : i32, i32
  }
}

</mosaic_0001>

<llo_original>
// kernel: tpu_custom_call.1
$region0: #{tpu_custom_call.1}
  #allocation0 [shape = 'u32[]', space=smem, size = 0x4, offset = 0x4, fixed_abs, tag = 'smem constant byte address 0x4 - core index']
  #allocation1 [shape = 'u32[144,128]{1,0:T(1,128)}', space=vmem, size = 0x12000, scoped, tag = 'internal scratch']
  %s0 = inlined_call_operand.vmem [shape: f32[16,32], index: 0, kind: input, shape index: {}]
  %s1 = inlined_call_operand.vmem [shape: bf16[32,16], index: 1, kind: input, shape index: {}]
  %s2 = inlined_call_operand.hbm [shape: bf16[16,128], index: 2, kind: input, shape index: {}]
  %s3 = inlined_call_operand.vmem [shape: f32[16,32], index: 3, kind: input, shape index: {}]
  %s4 = inlined_call_operand.hbm [shape: bf16[32,128], index: 4, kind: input, shape index: {}]
  %s5 = inlined_call_operand.vmem [shape: f32[1,128], index: 5, kind: input, shape index: {}]
  %s6 = inlined_call_operand.hbm [shape: bf16[16,128], index: 6, kind: output, shape index: {}]
  %s7 = sld [smem:[#allocation0]]
  $region42: #{tpu_custom_call.1} parent=0
    _
  %s9 = ssub.s32 1, %s7
  %s10 = scalar_select 0, %s9, %s7
  $region1: #{tpu_custom_call.1} parent=0
    #allocation2 [shape = 'u8[4096]{0}', space=vmem, size = 0x1000, scoped, tag = 'input window, operand 2, single buffered']
    #allocation3 [shape = 's32[1]{0}', space=sflag, size = 0x4, scoped, tag = 'scoped memory for tpu_custom_call.1']
    #allocation4 [shape = 's32[1]{0}', space=sflag, size = 0x4, scoped, tag = 'scoped memory for tpu_custom_call.1']
    #allocation5 [shape = 'u8[8192]{0}', space=vmem, size = 0x2000, scoped, tag = 'input window, operand 4, single buffered']
    #allocation6 [shape = 's32[1]{0}', space=sflag, size = 0x4, scoped, tag = 'scoped memory for tpu_custom_call.1']
    #allocation7 [shape = 'u8[4096]{0}', space=vmem, size = 0x1000, scoped, tag = 'output window, operand 0, single buffered']
    %11 = vsyncpa [#allocation3], 0
    %12 = vsyncpa [#allocation6], 0
    %13 = vsyncpa [#allocation4], 0
    // Predicated region
    $region2: #{tpu_custom_call.1} parent=1 // pred_check
      _
    $region3: #{tpu_custom_call.1} parent=1 // pred_check_branch
      %15 = sbr.rel (0) target = $region5
    $region4: #{tpu_custom_call.1} parent=1 // pred_region
      _
    $region5: #{tpu_custom_call.1} parent=1 // pred_fallthru
      _
    // Predicated region
    $region6: #{tpu_custom_call.1} parent=1 // pred_check
      _
    $region7: #{tpu_custom_call.1} parent=1 // pred_check_branch
      %17 = sbr.rel (0) target = $region9
    $region8: #{tpu_custom_call.1} parent=1 // pred_region
      _
    $region9: #{tpu_custom_call.1} parent=1 // pred_fallthru
      _
    // Predicated region
    $region10: #{tpu_custom_call.1} parent=1 // pred_check
      _
    $region11: #{tpu_custom_call.1} parent=1 // pred_check_branch
      %19 = sbr.rel (0) target = $region13
    $region12: #{tpu_custom_call.1} parent=1 // pred_region
      %s21 = ssub.s32 128, 128
      %22 = vsyncadd [#allocation3], %s21
      %s23 = sshll.u32 [#allocation2], 4
      %s24 = int_to_ptr.vmem [resolvable:$true] %s23
      %29 = dma.hbm_to_vmem [thread:$0]  %s2, 128, %s24, [#allocation3], 64, 64, 4
    $region13: #{tpu_custom_call.1} parent=1 // pred_fallthru
      _
    // Predicated region
    $region14: #{tpu_custom_call.1} parent=1 // pred_check
      _
    $region15: #{tpu_custom_call.1} parent=1 // pred_check_branch
      %31 = sbr.rel (0) target = $region17
    $region16: #{tpu_custom_call.1} parent=1 // pred_region
      _
    $region17: #{tpu_custom_call.1} parent=1 // pred_fallthru
      _
    // Predicated region
    $region18: #{tpu_custom_call.1} parent=1 // pred_check
      _
    $region19: #{tpu_custom_call.1} parent=1 // pred_check_branch
      %33 = sbr.rel (0) target = $region21
    $region20: #{tpu_custom_call.1} parent=1 // pred_region
      %s35 = ssub.s32 256, 256
      %36 = vsyncadd [#allocation6], %s35
      %s37 = sshll.u32 [#allocation5], 4
      %s38 = int_to_ptr.vmem [resolvable:$true] %s37
      %43 = dma.hbm_to_vmem [thread:$0]  %s4, 256, %s38, [#allocation6], 64, 64, 4
    $region21: #{tpu_custom_call.1} parent=1 // pred_fallthru
      _
    // Predicated region
    $region22: #{tpu_custom_call.1} parent=1 // pred_check
      _
    $region23: #{tpu_custom_call.1} parent=1 // pred_check_branch
      %45 = sbr.rel (0) target = $region25
    $region24: #{tpu_custom_call.1} parent=1 // pred_region
      _
    $region25: #{tpu_custom_call.1} parent=1 // pred_fallthru
      _
    // Predicated region
    $region26: #{tpu_custom_call.1} parent=1 // pred_check
      _
    $region27: #{tpu_custom_call.1} parent=1 // pred_check_branch
      %47 = sbr.rel (0) target = $region29
    $region28: #{tpu_custom_call.1} parent=1 // pred_region
      %48 = dma.done [#allocation3], 128
    $region29: #{tpu_custom_call.1} parent=1 // pred_fallthru
      _
    // Predicated region
    $region30: #{tpu_custom_call.1} parent=1 // pred_check
      _
    $region31: #{tpu_custom_call.1} parent=1 // pred_check_branch
      %50 = sbr.rel (0) target = $region33
    $region32: #{tpu_custom_call.1} parent=1 // pred_region
      %51 = dma.done [#allocation6], 256
    $region33: #{tpu_custom_call.1} parent=1 // pred_fallthru
      _
    %v53 = vld [vmem:[%s0] sm:$0xff]
    %v54 = vld [vmem:[%s0 + $0x8] sm:$0xff]
    %v55 = vpack.c.bf16 %v54, %v53
    %v56 = vld [vmem:[%s1] sm:$0xf]
    %v57 = vld [vmem:[%s1 + $0x4] sm:$0xf]
    %v58 = vld [vmem:[%s1 + $0x8] sm:$0xf]
    %v59 = vld [vmem:[%s1 + $0xc] sm:$0xf]
    %v64 = vunpack.c.l.b16 %v56
    %v65 = vunpack.c.l.b16 %v57
    %v66 = vunpack.c.l.b16 %v58
    %v67 = vunpack.c.l.b16 %v59
    %v68 = vpack.c.b16 %v65, %v64
    %v69 = vpack.c.b16 %v67, %v66
    %vm72 = vcmask 261120
    %v74 = vsel %vm72, %v55, 0
    %76 = vmatprep.subr.bf16.mxu0 0
    %77 = vmatpush1.bf16.msra.mxu0 %v68
    %78 = vmatprep.subr.bf16.mxu0 0
    %79 = vmatpush1.bf16.msra.mxu0 %v69
    %80 = vmatprep.subr.bf16.mxu0 0
    %81 = vmatpush1.bf16.msra.mxu0 0
    %82 = vmatprep.subr.bf16.mxu0 0
    %83 = vmatpush1.bf16.msra.mxu0 0
    %84 = vmatprep.subr.bf16.mxu0 0
    %85 = vmatpush1.bf16.msra.mxu0 0
    %86 = vmatprep.subr.bf16.mxu0 0
    %87 = vmatpush1.bf16.msra.mxu0 0
    %88 = vmatprep.subr.bf16.mxu0 0
    %89 = vmatpush1.bf16.msra.mxu0 0
    %90 = vmatprep.subr.bf16.mxu0 0
    %91 = vmatpush1.bf16.msra.mxu0 0
    %92 = vmatprep.subr.bf16.mxu0 0
    %93 = vmatpush1.bf16.msra.mxu0 0
    %94 = vmatprep.subr.bf16.mxu0 0
    %95 = vmatpush1.bf16.msra.mxu0 0
    %96 = vmatprep.subr.bf16.mxu0 0
    %97 = vmatpush1.bf16.msra.mxu0 0
    %98 = vmatprep.subr.bf16.mxu0 0
    %99 = vmatpush1.bf16.msra.mxu0 0
    %100 = vmatprep.subr.bf16.mxu0 0
    %101 = vmatpush1.bf16.msra.mxu0 0
    %102 = vmatprep.subr.bf16.mxu0 0
    %103 = vmatpush1.bf16.msra.mxu0 0
    %104 = vmatprep.subr.bf16.mxu0 0
    %105 = vmatpush1.bf16.msra.mxu0 0
    %106 = vmatprep.subr.bf16.mxu0 0
    %107 = vmatpush1.bf16.msra.mxu0 0
    %108 = vmatprep.mubr.bf16.mxu0 0
    %109 = vmatmul.mubr.bf16.gmra.mrb[0].mxu0 %v74
    %v110 = vpop.f32.mrb[0].mxu0
    %v111 = vadd.f32 0.0, %v110
    %v112 = vpop.f32.mrb[0].mxu0
    %v113 = vpop.f32.mrb[0].mxu0
    %v114 = vadd.f32 0.0, %v113
    %v115 = vpop.f32.mrb[0].mxu0
    %116 = vdwg.mxu0
    %vm117 = vcmask 130048
    %v118 = vsel %vm117, %v111, -inf
    %119 = vmax.xlane.f32.xlu0 %v118
    %v120 = vpop.xlane.xlu0 %119
    %v121 = vsel %vm117, %v114, -inf
    %122 = vmax.xlane.f32.xlu0 %v121
    %v123 = vpop.xlane.xlu0 %122
    %v124 = vsub.f32 %v111, %v120
    %v125 = vsub.f32 %v114, %v123
    %v126 = vmul.f32 %v124, 1.442695
    %v127 = vpow.pop %v126
    %v128 = vmul.f32 %v125, 1.442695
    %v129 = vpow.pop %v128
    %v130 = vsel %vm117, %v127, 0.0
    %131 = vadd.xlane.f32.xlu0 %v130
    %v132 = vpop.xlane.xlu0 %131
    %v133 = vsel %vm117, %v129, 0.0
    %134 = vadd.xlane.f32.xlu0 %v133
    %v135 = vpop.xlane.xlu0 %134
    %v136 = vrcp.pop %v132
    %v137 = vrcp.pop %v135
    %v138 = vmul.f32 %v127, %v136
    %v139 = vmul.f32 %v129, %v137
    %v140 = vpack.c.bf16 %v139, %v138
    %v141 = vld [vmem:[#allocation2] sm:$0xf]
    %v142 = vld [vmem:[#allocation2 + $0x4] sm:$0xf]
    %v143 = vld [vmem:[%s3] sm:$0xff]
    %v144 = vld [vmem:[%s3 + $0x8] sm:$0xff]
    %v145 = vpack.c.bf16 %v144, %v143
    %v146 = vld [vmem:[#allocation5] sm:$0xf]
    %v147 = vld [vmem:[#allocation5 + $0x4] sm:$0xf]
    %v148 = vld [vmem:[#allocation5 + $0x8] sm:$0xf]
    %v149 = vld [vmem:[#allocation5 + $0xc] sm:$0xf]
    %v154 = vunpack.c.l.b16 %v146
    %v155 = vunpack.c.l.b16 %v147
    %v156 = vunpack.c.l.b16 %v148
    %v157 = vunpack.c.l.b16 %v149
    %v158 = vpack.c.b16 %v155, %v154
    %v159 = vpack.c.b16 %v157, %v156
    %v163 = vsel %vm72, %v145, 0
    %165 = vmatprep.subr.bf16.mxu0 0
    %166 = vmatpush1.bf16.msra.mxu0 %v158
    %167 = vmatprep.subr.bf16.mxu0 0
    %168 = vmatpush1.bf16.msra.mxu0 %v159
    %169 = vmatprep.subr.bf16.mxu0 0
    %170 = vmatpush1.bf16.msra.mxu0 0
    %171 = vmatprep.subr.bf16.mxu0 0
    %172 = vmatpush1.bf16.msra.mxu0 0
    %173 = vmatprep.subr.bf16.mxu0 0
    %174 = vmatpush1.bf16.msra.mxu0 0
    %175 = vmatprep.subr.bf16.mxu0 0
    %176 = vmatpush1.bf16.msra.mxu0 0
    %177 = vmatprep.subr.bf16.mxu0 0
    %178 = vmatpush1.bf16.msra.mxu0 0
    %179 = vmatprep.subr.bf16.mxu0 0
    %180 = vmatpush1.bf16.msra.mxu0 0
    %181 = vmatprep.subr.bf16.mxu0 0
    %182 = vmatpush1.bf16.msra.mxu0 0
    %183 = vmatprep.subr.bf16.mxu0 0
    %184 = vmatpush1.bf16.msra.mxu0 0
    %185 = vmatprep.subr.bf16.mxu0 0
    %186 = vmatpush1.bf16.msra.mxu0 0
    %187 = vmatprep.subr.bf16.mxu0 0
    %188 = vmatpush1.bf16.msra.mxu0 0
    %189 = vmatprep.subr.bf16.mxu0 0
    %190 = vmatpush1.bf16.msra.mxu0 0
    %191 = vmatprep.subr.bf16.mxu0 0
    %192 = vmatpush1.bf16.msra.mxu0 0
    %193 = vmatprep.subr.bf16.mxu0 0
    %194 = vmatpush1.bf16.msra.mxu0 0
    %195 = vmatprep.subr.bf16.mxu0 0
    %196 = vmatpush1.bf16.msra.mxu0 0
    %197 = vmatprep.mubr.bf16.mxu0 0
    %198 = vmatmul.mubr.bf16.gmra.mrb[0].mxu0 %v163
    %v199 = vpop.f32.mrb[0].mxu0
    %v200 = vadd.f32 0.0, %v199
    %v201 = vpop.f32.mrb[0].mxu0
    %v202 = vpop.f32.mrb[0].mxu0
    %v203 = vadd.f32 0.0, %v202
    %v204 = vpop.f32.mrb[0].mxu0
    %205 = vdwg.mxu0
    %v208 = vunpack.c.l.b16 %v141
    %v209 = vunpack.c.l.b16 %v142
    %v210 = vpack.c.b16 %v209, %v208
    %v213 = vsel %vm117, %v140, 0
    %215 = vmatprep.subr.bf16.mxu0 0
    %216 = vmatpush1.bf16.msra.mxu0 %v210
    %217 = vmatprep.subr.bf16.mxu0 0
    %218 = vmatpush1.bf16.msra.mxu0 0
    %219 = vmatprep.subr.bf16.mxu0 0
    %220 = vmatpush1.bf16.msra.mxu0 0
    %221 = vmatprep.subr.bf16.mxu0 0
    %222 = vmatpush1.bf16.msra.mxu0 0
    %223 = vmatprep.subr.bf16.mxu0 0
    %224 = vmatpush1.bf16.msra.mxu0 0
    %225 = vmatprep.subr.bf16.mxu0 0
    %226 = vmatpush1.bf16.msra.mxu0 0
    %227 = vmatprep.subr.bf16.mxu0 0
    %228 = vmatpush1.bf16.msra.mxu0 0
    %229 = vmatprep.subr.bf16.mxu0 0
    %230 = vmatpush1.bf16.msra.mxu0 0
    %231 = vmatprep.subr.bf16.mxu0 0
    %232 = vmatpush1.bf16.msra.mxu0 0
    %233 = vmatprep.subr.bf16.mxu0 0
    %234 = vmatpush1.bf16.msra.mxu0 0
    %235 = vmatprep.subr.bf16.mxu0 0
    %236 = vmatpush1.bf16.msra.mxu0 0
    %237 = vmatprep.subr.bf16.mxu0 0
    %238 = vmatpush1.bf16.msra.mxu0 0
    %239 = vmatprep.subr.bf16.mxu0 0
    %240 = vmatpush1.bf16.msra.mxu0 0
    %241 = vmatprep.subr.bf16.mxu0 0
    %242 = vmatpush1.bf16.msra.mxu0 0
    %243 = vmatprep.subr.bf16.mxu0 0
    %244 = vmatpush1.bf16.msra.mxu0 0
    %245 = vmatprep.subr.bf16.mxu0 0
    %246 = vmatpush1.bf16.msra.mxu0 0
    %247 = vmatprep.mubr.bf16.mxu0 0
    %248 = vmatmul.mubr.bf16.gmra.mrb[0].mxu0 %v213
    %v249 = vpop.f32.mrb[0].mxu0
    %v250 = vadd.f32 %v200, %v249
    %v251 = vpop.f32.mrb[0].mxu0
    %v252 = vpop.f32.mrb[0].mxu0
    %v253 = vadd.f32 %v203, %v252
    %v254 = vpop.f32.mrb[0].mxu0
    %255 = vdwg.mxu0
    %v256 = vld [vmem:[%s5] sm:$0x1]
    %v258 = vlaneseq
    %v259 = vshrl.u32 %v258, 7
    %v260 = vsub.s32 0, %v259
    %v261 = vrot.slane %v256, %v260
    %v263 = vadd.f32 %v250, %v261
    %v264 = vadd.f32 %v253, %v261
    %v265 = vpack.c.bf16 %v264, %v263
    %v267 = vunpack.c.l.b16 %v265
    %v268 = vunpack.c.h.b16 %v265
    %v269 = vpack.c.b16 %v267, %v267
    %v270 = vpack.c.b16 %v268, %v268
    %273 = vst [vmem:[#allocation7] sm:$0xf] %v269
    %274 = vst [vmem:[#allocation7 + $0x4] sm:$0xf] %v270
    // Predicated region
    $region34: #{tpu_custom_call.1} parent=1 // pred_check
      _
    $region35: #{tpu_custom_call.1} parent=1 // pred_check_branch
      %276 = sbr.rel (0) target = $region37
    $region36: #{tpu_custom_call.1} parent=1 // pred_region
      %s278 = ssub.s32 128, 128
      %279 = vsyncadd [#allocation4], %s278
      %s280 = sshll.u32 [#allocation7], 4
      %s281 = int_to_ptr.vmem [resolvable:$true] %s280
      %286 = dma.vmem_to_hbm [thread:$0]  %s281, 128, %s6, [#allocation4], 64, 64, 4
    $region37: #{tpu_custom_call.1} parent=1 // pred_fallthru
      _
    // Predicated region
    $region38: #{tpu_custom_call.1} parent=1 // pred_check
      _
    $region39: #{tpu_custom_call.1} parent=1 // pred_check_branch
      %288 = sbr.rel (0) target = $region41
    $region40: #{tpu_custom_call.1} parent=1 // pred_region
      %289 = dma.done [#allocation4], 128
    $region41: #{tpu_custom_call.1} parent=1 // pred_fallthru
      _
    %290 = vsyncpa [#allocation3], 1
    %291 = vsyncpa [#allocation6], 1
    %292 = vsyncpa [#allocation4], 1

</llo_original>
